<compile_context>
chip_gen: v5e
topology: v5e:2x2
jax: 0.10.0
libtpu: 0.0.40
codegen_flags: <defaults>
</compile_context>

<pallas_src>
import math

import jax
import jax.numpy as jnp
from jax.experimental import pallas as pl
from jax.experimental.pallas import tpu as pltpu


LANE = 128      # vreg lane width; gate slices / output stores are lane-aligned
SUBLANE = 8

# Flipped off (once) if pipeline_mode=pl.Buffered(1) is rejected by this build.
_SINGLE_BUFFER_WEIGHTS = True


def _round_up(x, m):
    return (x + m - 1) // m * m


# --------------------------------------------------------------------------
# One-time parameter packing (nothing layout-related happens per step).
# --------------------------------------------------------------------------
def pack_gru_params(w_ih, w_hh, b_ih, b_hh, *, compute_dtype=jnp.bfloat16):
    """Repack PyTorch-layout GRUCell params for the Pallas kernels.

    w_ih: [3H, in]  w_hh: [3H, H]  b_ih, b_hh: [3H]
    Gate order along the 3H axis (PyTorch chunk order): (reset, update, new).

    Returns lane-aligned, pre-transposed tensors:
      w_ih: [in, 3*Hp]  (gate g occupies lanes [g*Hp, g*Hp + H))
      w_hh: [Hp, 3*Hp]  (pad rows/cols are zero, so padded hid lanes stay 0)
      b_x : [1, 3*Hp]   f32; r/z lanes hold b_ih+b_hh pre-summed, n lanes b_ih_n
      b_h : [1, Hp]     f32; n-gate hidden bias only (scaled by the reset gate)

    compute_dtype=bfloat16 (default) is the native MXU path on v5e/v6e/v7x and
    halves weight residency; accumulation and the gate epilogue stay float32.
    Pass compute_dtype=float32 where bit-tight accuracy matters.
    """
    three_h, in_size = w_ih.shape
    H = three_h // 3
    Hp = _round_up(H, LANE)

    def split_gates(w):                     # [3H, K] -> (r, z, n), each [K, H]
        return tuple(w[g * H:(g + 1) * H, :].T for g in range(3))

    ih_parts = split_gates(w_ih)
    hh_parts = split_gates(w_hh)

    def place(parts, k_rows):               # -> [k_rows, 3*Hp], lane-padded per gate
        out = jnp.zeros((k_rows, 3 * Hp), compute_dtype)
        for g, p in enumerate(parts):
            out = out.at[:, g * Hp:g * Hp + H].set(p.astype(compute_dtype))
        return out

    w_ih_p = place(ih_parts, in_size)
    w_hh_p = jnp.zeros((Hp, 3 * Hp), compute_dtype).at[:H, :].set(
        place(hh_parts, H))

    b_ih = b_ih.astype(jnp.float32)
    b_hh = b_hh.astype(jnp.float32)
    b_x = jnp.zeros((1, 3 * Hp), jnp.float32)
    b_x = b_x.at[0, 0 * Hp:0 * Hp + H].set(b_ih[0:H] + b_hh[0:H])          # reset
    b_x = b_x.at[0, 1 * Hp:1 * Hp + H].set(b_ih[H:2 * H] + b_hh[H:2 * H])  # update
    b_x = b_x.at[0, 2 * Hp:2 * Hp + H].set(b_ih[2 * H:3 * H])              # new (x side)
    b_h = jnp.zeros((1, Hp), jnp.float32).at[0, :H].set(b_hh[2 * H:3 * H]) # new (h side)

    return dict(w_ih=w_ih_p, w_hh=w_hh_p, b_x=b_x, b_h=b_h,
                H=H, Hp=Hp, in_size=in_size)


# --------------------------------------------------------------------------
# Tiling / VMEM helpers
# --------------------------------------------------------------------------
def _batch_tiling(B, block_b):
    """Pick (bm, B_pad): bm multiple of 8 and, whenever the batch allows it,
    at least 2 grid steps so the 'parallel' axis shards over v7x's 2 TCs.
    (block_b default 256 matches v6e/v7x MXU M-dim; use 128 on v5e.)"""
    B8 = _round_up(max(int(B), 1), SUBLANE)
    bm_max = max(SUBLANE, _round_up(int(block_b), SUBLANE))
    n_tiles = -(-B8 // bm_max)
    if n_tiles == 1 and B8 > SUBLANE:        # v7x: give both TensorCores a tile
        n_tiles = 2
    bm = _round_up(-(-B8 // n_tiles), SUBLANE)
    return bm, n_tiles * bm


def _vmem_limit(*buffers):
    """buffers: (num_buffers, n_elems, itemsize) triples.  25% headroom,
    floored at 32 MiB; keep the result well under 64 MiB when targeting v7x."""
    est = sum(nb * ne * it for nb, ne, it in buffers)
    return int(max(32 << 20, min(est * 5 // 4 + (2 << 20), 128 << 20)))


# --------------------------------------------------------------------------
# Single-step kernel
# --------------------------------------------------------------------------
def _gru_cell_kernel(x_ref, hid_ref, wih_ref, whh_ref, bx_ref, bh_ref, out_ref):
    """One batch tile: two MXU dots + lane-aligned gated update (f32 epilogue)."""
    Hp = out_ref.shape[-1]
    cdt = wih_ref.dtype                      # matmul dtype (bf16 or f32 weights)
    hid = hid_ref[...]

    gx = jnp.dot(x_ref[...].astype(cdt), wih_ref[...],
                 preferred_element_type=jnp.float32) + bx_ref[...]
    gh = jnp.dot(hid.astype(cdt), whh_ref[...],
                 preferred_element_type=jnp.float32)

    # reset/update share one sigmoid over a lane-aligned [bm, 2*Hp] slab (EUP).
    rz = jax.nn.sigmoid(gx[:, :2 * Hp] + gh[:, :2 * Hp])
    r, z = rz[:, :Hp], rz[:, Hp:]
    # n-gate hidden bias only on the n lanes (no +0 add over the r/z lanes).
    n = jnp.tanh(gx[:, 2 * Hp:] + r * (gh[:, 2 * Hp:] + bh_ref[...]))

    # hid_updated = n + z * (hid - n); lane-dense [bm, Hp] store.
    out_ref[...] = (n + z * (hid.astype(jnp.float32) - n)).astype(out_ref.dtype)


def _cell_call(B_pad, bm, in_size, Hp, x_dtype, h_dtype, params, single_buffer):
    # TODO(synk): gate-split 'arbitrary' grid axis for very large H (>=2048) on
    # v7x, bounding resident weights to one Hp-wide gate block at a time.
    resident = dict(pipeline_mode=pl.Buffered(1)) if single_buffer else {}
    nw = 1 if single_buffer else 2
    w_isz = jnp.dtype(params["w_ih"].dtype).itemsize
    limit = _vmem_limit(
        (nw, (in_size + Hp) * 3 * Hp, w_isz),                 # W_ih, W_hh
        (nw, 4 * Hp, 4),                                      # b_x, b_h
        (2, bm * in_size, jnp.dtype(x_dtype).itemsize),       # x tiles
        (4, bm * Hp, jnp.dtype(h_dtype).itemsize),            # hid + out tiles
        (8, bm * Hp, 4),                                      # f32 gx/gh/epilogue temps
    )
    return pl.pallas_call(
        _gru_cell_kernel,
        out_shape=jax.ShapeDtypeStruct((B_pad, Hp), h_dtype),
        grid=(B_pad // bm,),
        in_specs=[
            pl.BlockSpec((bm, in_size), lambda i: (i, 0)),            # x tile
            pl.BlockSpec((bm, Hp), lambda i: (i, 0)),                 # hid tile
            pl.BlockSpec((in_size, 3 * Hp), lambda i: (0, 0), **resident),  # W_ih
            pl.BlockSpec((Hp, 3 * Hp), lambda i: (0, 0), **resident),       # W_hh
            pl.BlockSpec((1, 3 * Hp), lambda i: (0, 0), **resident),        # b_x
            pl.BlockSpec((1, Hp), lambda i: (0, 0), **resident),            # b_h
        ],
        out_specs=pl.BlockSpec((bm, Hp), lambda i: (i, 0)),
        input_output_aliases={1: 0},    # new hid reuses the old hid HBM buffer
        compiler_params=pltpu.CompilerParams(
            dimension_semantics=("parallel",),   # v7x: batch tiles over 2 TCs
            vmem_limit_bytes=limit),
    )


def gru_cell_padded(x_p, hid_p, params, bm):
    """Hot-path GRU step on pre-padded activations.

    x_p: [B_pad, in_size], hid_p: [B_pad, Hp] with padded hid lanes zero and
    B_pad % bm == 0.  Returns the new hidden state in the same padded
    [B_pad, Hp] layout/dtype so it can be fed straight back in (no per-step
    pad/slice; the old hid buffer is aliased to the output).
    """
    global _SINGLE_BUFFER_WEIGHTS
    Hp, in_size = params["Hp"], params["in_size"]
    B_pad = x_p.shape[0]
    assert B_pad % bm == 0, "pad the batch with _batch_tiling() first"
    args = (x_p, hid_p, params["w_ih"], params["w_hh"], params["b_x"], params["b_h"])
    if _SINGLE_BUFFER_WEIGHTS:
        try:
            return _cell_call(B_pad, bm, in_size, Hp, x_p.dtype, hid_p.dtype,
                              params, True)(*args)
        except Exception:            # pl.Buffered(1) unsupported on this build
            _SINGLE_BUFFER_WEIGHTS = False
    return _cell_call(B_pad, bm, in_size, Hp, x_p.dtype, hid_p.dtype,
                      params, False)(*args)


def gru_cell(x, hid, params, *, block_b=256, activation_dtype=None):
    """GRUCell.forward(x, hid).  Pads/casts only at the boundary -- for loops,
    keep state padded and use gru_cell_padded() / gru_sequence() instead."""
    H, Hp, in_size = params["H"], params["Hp"], params["in_size"]
    B = x.shape[0]
    act_dt = activation_dtype if activation_dtype is not None else params["w_ih"].dtype
    bm, B_pad = _batch_tiling(B, block_b)
    x_p = jnp.zeros((B_pad, in_size), act_dt).at[:B, :].set(x.astype(act_dt))
    hid_p = jnp.zeros((B_pad, Hp), act_dt).at[:B, :H].set(hid.astype(act_dt))
    out = gru_cell_padded(x_p, hid_p, params, bm)
    return out[:B, :H]


# --------------------------------------------------------------------------
# Fused sequence kernel: the time loop lives inside one pallas_call
# --------------------------------------------------------------------------
def _gru_seq_kernel(gx_ref, hid0_ref, whh_ref, bh_ref, out_ref, hid_sc):
    """One (batch-tile, timestep) grid cell.  gx = x@W_ih + b_x is precomputed;
    hid is carried in a VMEM scratch accumulator across the time axis."""
    Hp = out_ref.shape[-1]
    cdt = whh_ref.dtype

    @pl.when(pl.program_id(1) == 0)
    def _():
        hid_sc[...] = hid0_ref[...].astype(jnp.float32)

    hid = hid_sc[...]
    gx = gx_ref[0]                                           # [bm, 3*Hp] f32
    gh = jnp.dot(hid.astype(cdt), whh_ref[...],
                 preferred_element_type=jnp.float32)

    rz = jax.nn.sigmoid(gx[:, :2 * Hp] + gh[:, :2 * Hp])
    r, z = rz[:, :Hp], rz[:, Hp:]
    n = jnp.tanh(gx[:, 2 * Hp:] + r * (gh[:, 2 * Hp:] + bh_ref[...]))
    new_hid = n + z * (hid - n)

    hid_sc[...] = new_hid                                    # stays in VMEM
    out_ref[0] = new_hid.astype(out_ref.dtype)


def _seq_call(T, B_pad, bm, Hp, h_dtype, params, single_buffer):
    resident = dict(pipeline_mode=pl.Buffered(1)) if single_buffer else {}
    nw = 1 if single_buffer else 2
    w_isz = jnp.dtype(params["w_hh"].dtype).itemsize
    limit = _vmem_limit(
        (nw, Hp * 3 * Hp, w_isz),                            # W_hh resident
        (nw, Hp, 4),                                         # b_h
        (2, bm * 3 * Hp, 4),                                 # gx tiles (f32)
        (4, bm * Hp, jnp.dtype(h_dtype).itemsize),           # hid0 + out tiles
        (1, bm * Hp, 4),                                     # hid scratch
        (8, bm * Hp, 4),                                     # f32 gh/epilogue temps
    )
    return pl.pallas_call(
        _gru_seq_kernel,
        out_shape=jax.ShapeDtypeStruct((T, B_pad, Hp), h_dtype),
        grid=(B_pad // bm, T),
        in_specs=[
            pl.BlockSpec((1, bm, 3 * Hp), lambda b, t: (t, b, 0)),        # gx[t]
            pl.BlockSpec((bm, Hp), lambda b, t: (b, 0)),                  # hid0
            pl.BlockSpec((Hp, 3 * Hp), lambda b, t: (0, 0), **resident),  # W_hh
            pl.BlockSpec((1, Hp), lambda b, t: (0, 0), **resident),       # b_h
        ],
        out_specs=pl.BlockSpec((1, bm, Hp), lambda b, t: (t, b, 0)),
        scratch_shapes=[pltpu.VMEM((bm, Hp), jnp.float32)],
        compiler_params=pltpu.CompilerParams(
            dimension_semantics=("parallel", "arbitrary"),
            vmem_limit_bytes=limit),
    )


def gru_sequence(x_seq, hid0, params, *, block_b=256):
    """Run the GRU over a whole sequence in ONE pallas_call.

    x_seq: [T, B, in_size], hid0: [B, H].  Returns all hidden states [T, B, H].
    gx = x @ W_ih + b_x is precomputed for every timestep as a single large
    matmul (full MXU efficiency, no recurrence); inside the kernel the hidden
    state lives in VMEM scratch (no per-step HBM round-trip) and W_hh stays
    resident across all T timesteps of a batch tile.
    """
    global _SINGLE_BUFFER_WEIGHTS
    H, Hp, in_size = params["H"], params["Hp"], params["in_size"]
    T, B, _ = x_seq.shape
    cdt = params["w_ih"].dtype
    bm, B_pad = _batch_tiling(B, block_b)

    x_p = jnp.zeros((T, B_pad, in_size), cdt).at[:, :B, :].set(x_seq.astype(cdt))
    # One big matmul outside the recurrence; gx kept f32 for the exact epilogue.
    gx = jnp.einsum("tbi,io->tbo", x_p, params["w_ih"],
                    preferred_element_type=jnp.float32) + params["b_x"]
    hid_p = jnp.zeros((B_pad, Hp), cdt).at[:B, :H].set(hid0.astype(cdt))

    args = (gx, hid_p, params["w_hh"], params["b_h"])
    if _SINGLE_BUFFER_WEIGHTS:
        try:
            out = _seq_call(T, B_pad, bm, Hp, cdt, params, True)(*args)
            return out[:, :B, :H]
        except Exception:            # pl.Buffered(1) unsupported on this build
            _SINGLE_BUFFER_WEIGHTS = False
    out = _seq_call(T, B_pad, bm, Hp, cdt, params, False)(*args)
    return out[:, :B, :H]


# --------------------------------------------------------------------------
# Pure-JAX reference (mirrors the PyTorch forward)
# --------------------------------------------------------------------------
def gru_cell_ref(x, hid, w_ih, w_hh, b_ih, b_hh):
    gate_x = x @ w_ih.T + b_ih
    gate_hid = hid @ w_hh.T + b_hh
    H = hid.shape[-1]
    x_reset, x_x, x_new = gate_x[:, :H], gate_x[:, H:2 * H], gate_x[:, 2 * H:]
    h_reset, h_x, h_new = gate_hid[:, :H], gate_hid[:, H:2 * H], gate_hid[:, 2 * H:]
    reset_gate = jax.nn.sigmoid(x_reset + h_reset)
    input_gate = jax.nn.sigmoid(x_x + h_x)
    new_gate = jnp.tanh(x_new + reset_gate * h_new)
    return new_gate + input_gate * (hid - new_gate)


if __name__ == "__main__":
    key = jax.random.PRNGKey(0)
    in_size, hid_size, batch, seq_len = 16, 32, 8, 6

    std = 1.0 / math.sqrt(hid_size)
    k = jax.random.split(key, 7)
    # Deterministic uniform(-std, std) init, matching adjust_params().
    w_ih = jax.random.uniform(k[0], (3 * hid_size, in_size), jnp.float32, -std, std)
    w_hh = jax.random.uniform(k[1], (3 * hid_size, hid_size), jnp.float32, -std, std)
    b_ih = jax.random.uniform(k[2], (3 * hid_size,), jnp.float32, -std, std)
    b_hh = jax.random.uniform(k[3], (3 * hid_size,), jnp.float32, -std, std)

    x = jax.random.normal(k[4], (batch, in_size), jnp.float32)
    hid = jax.random.normal(k[5], (batch, hid_size), jnp.float32)
    x_seq = jax.random.normal(k[6], (seq_len, batch, in_size), jnp.float32)

    ref = gru_cell_ref(x, hid, w_ih, w_hh, b_ih, b_hh)

    # ---- single step, float32 path (bit-tight check) ----------------------
    packed_f32 = pack_gru_params(w_ih, w_hh, b_ih, b_hh, compute_dtype=jnp.float32)
    out = jax.block_until_ready(gru_cell(x, hid, packed_f32))
    assert out.shape == (batch, hid_size)
    assert jnp.allclose(out, ref, atol=1e-5, rtol=1e-5)

    # ---- single step, default bf16 MXU path (looser tolerance) ------------
    packed_bf16 = pack_gru_params(w_ih, w_hh, b_ih, b_hh)   # bf16 by default
    out_bf16 = jax.block_until_ready(gru_cell(x, hid, packed_bf16))
    assert jnp.allclose(out_bf16.astype(jnp.float32), ref, atol=3e-2, rtol=3e-2)

    # ---- fused sequence kernel (time loop inside one pallas_call) ---------
    seq_out = jax.block_until_ready(gru_sequence(x_seq, hid, packed_f32))
    assert seq_out.shape == (seq_len, batch, hid_size)
    h_ref = hid
    for t in range(seq_len):
        h_ref = gru_cell_ref(x_seq[t], h_ref, w_ih, w_hh, b_ih, b_hh)
        assert jnp.allclose(seq_out[t], h_ref, atol=1e-4, rtol=1e-4)

    print("KERNEL_OK")
</pallas_src>

<mosaic_0001>
module attributes {stable_mosaic.version = 11 : i64} {
  func.func @_gru_cell_kernel(%arg0: i32, %arg1: memref<8x16xf32, #tpu.memory_space<vmem>>, %arg2: memref<8x128xf32, #tpu.memory_space<vmem>>, %arg3: memref<16x384xf32, #tpu.memory_space<vmem>>, %arg4: memref<128x384xf32, #tpu.memory_space<vmem>>, %arg5: memref<1x384xf32, #tpu.memory_space<vmem>>, %arg6: memref<1x128xf32, #tpu.memory_space<vmem>>, %arg7: memref<8x128xf32, #tpu.memory_space<vmem>>) attributes {dimension_semantics = [#tpu.dimension_semantics<parallel>], iteration_bounds = array<i64: 1>, scalar_prefetch = 0 : i64, scratch_operands = 0 : i64, tpu.core_type = #tpu.core_type<tc>, window_params = [{transform_indices = @transform_0, window_bounds = array<i64: 8, 16>}, {transform_indices = @transform_1, window_bounds = array<i64: 8, 128>}, {pipeline_mode = #tpu.pipeline_mode<synchronous>, transform_indices = @transform_2, window_bounds = array<i64: 16, 384>}, {pipeline_mode = #tpu.pipeline_mode<synchronous>, transform_indices = @transform_3, window_bounds = array<i64: 128, 384>}, {pipeline_mode = #tpu.pipeline_mode<synchronous>, transform_indices = @transform_4, window_bounds = array<i64: 1, 384>}, {pipeline_mode = #tpu.pipeline_mode<synchronous>, transform_indices = @transform_5, window_bounds = array<i64: 1, 128>}, {transform_indices = @transform_6, window_bounds = array<i64: 8, 128>}]} {
    %c0 = arith.constant 0 : index
    %c0_0 = arith.constant 0 : index
    %0 = vector.load %arg2[%c0, %c0_0] : memref<8x128xf32, #tpu.memory_space<vmem>>, vector<8x128xf32>
    %c0_1 = arith.constant 0 : index
    %c0_2 = arith.constant 0 : index
    %1 = vector.load %arg1[%c0_1, %c0_2] : memref<8x16xf32, #tpu.memory_space<vmem>>, vector<8x16xf32>
    %c0_3 = arith.constant 0 : index
    %c0_4 = arith.constant 0 : index
    %2 = vector.load %arg3[%c0_3, %c0_4] : memref<16x384xf32, #tpu.memory_space<vmem>>, vector<16x384xf32>
    %cst = arith.constant dense<0.000000e+00> : vector<8x384xf32>
    %3 = tpu.matmul %1, %2, %cst {dimension_numbers = #tpu.dot_dimension_numbers<[1], [0], [0], [1], [0, 0, 1, 1], [], []>} : vector<8x16xf32>, vector<16x384xf32>, vector<8x384xf32> -> vector<8x384xf32>
    %c0_5 = arith.constant 0 : index
    %c0_6 = arith.constant 0 : index
    %4 = vector.load %arg5[%c0_5, %c0_6] : memref<1x384xf32, #tpu.memory_space<vmem>>, vector<1x384xf32>
    %5 = vector.broadcast %4 : vector<1x384xf32> to vector<8x384xf32>
    %6 = arith.addf %3, %5 : vector<8x384xf32>
    %c0_7 = arith.constant 0 : index
    %c0_8 = arith.constant 0 : index
    %7 = vector.load %arg4[%c0_7, %c0_8] : memref<128x384xf32, #tpu.memory_space<vmem>>, vector<128x384xf32>
    %cst_9 = arith.constant dense<0.000000e+00> : vector<8x384xf32>
    %8 = tpu.matmul %0, %7, %cst_9 {dimension_numbers = #tpu.dot_dimension_numbers<[1], [0], [0], [1], [0, 0, 1, 1], [], []>} : vector<8x128xf32>, vector<128x384xf32>, vector<8x384xf32> -> vector<8x384xf32>
    %9 = vector.extract_strided_slice %6 {offsets = [0, 0], sizes = [8, 256], strides = [1, 1]} : vector<8x384xf32> to vector<8x256xf32>
    %10 = vector.extract_strided_slice %8 {offsets = [0, 0], sizes = [8, 256], strides = [1, 1]} : vector<8x384xf32> to vector<8x256xf32>
    %11 = arith.addf %9, %10 : vector<8x256xf32>
    %12 = arith.negf %11 : vector<8x256xf32>
    %13 = math.exp %12 : vector<8x256xf32>
    %cst_10 = arith.constant 1.000000e+00 : f32
    %14 = vector.broadcast %cst_10 : f32 to vector<8x256xf32>
    %15 = arith.addf %14, %13 : vector<8x256xf32>
    %16 = arith.divf %14, %15 : vector<8x256xf32>
    %17 = vector.extract_strided_slice %16 {offsets = [0, 0], sizes = [8, 128], strides = [1, 1]} : vector<8x256xf32> to vector<8x128xf32>
    %18 = vector.extract_strided_slice %16 {offsets = [0, 128], sizes = [8, 128], strides = [1, 1]} : vector<8x256xf32> to vector<8x128xf32>
    %19 = vector.extract_strided_slice %6 {offsets = [0, 256], sizes = [8, 128], strides = [1, 1]} : vector<8x384xf32> to vector<8x128xf32>
    %20 = vector.extract_strided_slice %8 {offsets = [0, 256], sizes = [8, 128], strides = [1, 1]} : vector<8x384xf32> to vector<8x128xf32>
    %c0_11 = arith.constant 0 : index
    %c0_12 = arith.constant 0 : index
    %21 = vector.load %arg6[%c0_11, %c0_12] : memref<1x128xf32, #tpu.memory_space<vmem>>, vector<1x128xf32>
    %22 = vector.broadcast %21 : vector<1x128xf32> to vector<8x128xf32>
    %23 = arith.addf %20, %22 : vector<8x128xf32>
    %24 = arith.mulf %17, %23 : vector<8x128xf32>
    %25 = arith.addf %19, %24 : vector<8x128xf32>
    %26 = math.tanh %25 : vector<8x128xf32>
    %27 = arith.subf %0, %26 : vector<8x128xf32>
    %28 = arith.mulf %18, %27 : vector<8x128xf32>
    %29 = arith.addf %26, %28 : vector<8x128xf32>
    %c0_13 = arith.constant 0 : index
    %c0_14 = arith.constant 0 : index
    %30 = vector.load %arg7[%c0_13, %c0_14] : memref<8x128xf32, #tpu.memory_space<vmem>>, vector<8x128xf32>
    tpu.vector_store %arg7[%c0_13, %c0_14], %29 {strides = array<i32>} : memref<8x128xf32, #tpu.memory_space<vmem>>, vector<8x128xf32>,
    return
  }
  func.func @transform_0(%arg0: i32) -> (i32, i32) {
    %c0_i32 = arith.constant 0 : i32
    %c0_i32_0 = arith.constant 0 : i32
    return %arg0, %c0_i32 : i32, i32
  }
  func.func @transform_1(%arg0: i32) -> (i32, i32) {
    %c0_i32 = arith.constant 0 : i32
    %c0_i32_0 = arith.constant 0 : i32
    return %arg0, %c0_i32 : i32, i32
  }
  func.func @transform_2(%arg0: i32) -> (i32, i32) {
    %c0_i32 = arith.constant 0 : i32
    %c0_i32_0 = arith.constant 0 : i32
    %c0_i32_1 = arith.constant 0 : i32
    return %c0_i32, %c0_i32_0 : i32, i32
  }
  func.func @transform_3(%arg0: i32) -> (i32, i32) {
    %c0_i32 = arith.constant 0 : i32
    %c0_i32_0 = arith.constant 0 : i32
    %c0_i32_1 = arith.constant 0 : i32
    return %c0_i32, %c0_i32_0 : i32, i32
  }
  func.func @transform_4(%arg0: i32) -> (i32, i32) {
    %c0_i32 = arith.constant 0 : i32
    %c0_i32_0 = arith.constant 0 : i32
    %c0_i32_1 = arith.constant 0 : i32
    return %c0_i32, %c0_i32_0 : i32, i32
  }
  func.func @transform_5(%arg0: i32) -> (i32, i32) {
    %c0_i32 = arith.constant 0 : i32
    %c0_i32_0 = arith.constant 0 : i32
    %c0_i32_1 = arith.constant 0 : i32
    return %c0_i32, %c0_i32_0 : i32, i32
  }
  func.func @transform_6(%arg0: i32) -> (i32, i32) {
    %c0_i32 = arith.constant 0 : i32
    %c0_i32_0 = arith.constant 0 : i32
    return %arg0, %c0_i32 : i32, i32
  }
}

module attributes {stable_mosaic.version = 11 : i64} {
  func.func @_gru_cell_kernel(%arg0: i32, %arg1: memref<8x16xf32, #tpu.memory_space<vmem>>, %arg2: memref<8x128xf32, #tpu.memory_space<vmem>>, %arg3: memref<16x384xf32, #tpu.memory_space<vmem>>, %arg4: memref<128x384xf32, #tpu.memory_space<vmem>>, %arg5: memref<1x384xf32, #tpu.memory_space<vmem>>, %arg6: memref<1x128xf32, #tpu.memory_space<vmem>>, %arg7: memref<8x128xf32, #tpu.memory_space<vmem>>) attributes {dimension_semantics = [#tpu.dimension_semantics<parallel>], iteration_bounds = array<i64: 1>, scalar_prefetch = 0 : i64, scratch_operands = 0 : i64, tpu.core_type = #tpu.core_type<tc>, window_params = [{transform_indices = @transform_0, window_bounds = array<i64: 8, 16>}, {transform_indices = @transform_1, window_bounds = array<i64: 8, 128>}, {pipeline_mode = #tpu.pipeline_mode<synchronous>, transform_indices = @transform_2, window_bounds = array<i64: 16, 384>}, {pipeline_mode = #tpu.pipeline_mode<synchronous>, transform_indices = @transform_3, window_bounds = array<i64: 128, 384>}, {pipeline_mode = #tpu.pipeline_mode<synchronous>, transform_indices = @transform_4, window_bounds = array<i64: 1, 384>}, {pipeline_mode = #tpu.pipeline_mode<synchronous>, transform_indices = @transform_5, window_bounds = array<i64: 1, 128>}, {transform_indices = @transform_6, window_bounds = array<i64: 8, 128>}]} {
    %c0 = arith.constant 0 : index
    %c0_0 = arith.constant 0 : index
    %0 = vector.load %arg2[%c0, %c0_0] : memref<8x128xf32, #tpu.memory_space<vmem>>, vector<8x128xf32>
    %c0_1 = arith.constant 0 : index
    %c0_2 = arith.constant 0 : index
    %1 = vector.load %arg1[%c0_1, %c0_2] : memref<8x16xf32, #tpu.memory_space<vmem>>, vector<8x16xf32>
    %c0_3 = arith.constant 0 : index
    %c0_4 = arith.constant 0 : index
    %2 = vector.load %arg3[%c0_3, %c0_4] : memref<16x384xf32, #tpu.memory_space<vmem>>, vector<16x384xf32>
    %cst = arith.constant dense<0.000000e+00> : vector<8x384xf32>
    %3 = tpu.matmul %1, %2, %cst {dimension_numbers = #tpu.dot_dimension_numbers<[1], [0], [0], [1], [0, 0, 1, 1], [], []>} : vector<8x16xf32>, vector<16x384xf32>, vector<8x384xf32> -> vector<8x384xf32>
    %c0_5 = arith.constant 0 : index
    %c0_6 = arith.constant 0 : index
    %4 = vector.load %arg5[%c0_5, %c0_6] : memref<1x384xf32, #tpu.memory_space<vmem>>, vector<1x384xf32>
    %5 = vector.broadcast %4 : vector<1x384xf32> to vector<8x384xf32>
    %6 = arith.addf %3, %5 : vector<8x384xf32>
    %c0_7 = arith.constant 0 : index
    %c0_8 = arith.constant 0 : index
    %7 = vector.load %arg4[%c0_7, %c0_8] : memref<128x384xf32, #tpu.memory_space<vmem>>, vector<128x384xf32>
    %cst_9 = arith.constant dense<0.000000e+00> : vector<8x384xf32>
    %8 = tpu.matmul %0, %7, %cst_9 {dimension_numbers = #tpu.dot_dimension_numbers<[1], [0], [0], [1], [0, 0, 1, 1], [], []>} : vector<8x128xf32>, vector<128x384xf32>, vector<8x384xf32> -> vector<8x384xf32>
    %9 = vector.extract_strided_slice %6 {offsets = [0, 0], sizes = [8, 256], strides = [1, 1]} : vector<8x384xf32> to vector<8x256xf32>
    %10 = vector.extract_strided_slice %8 {offsets = [0, 0], sizes = [8, 256], strides = [1, 1]} : vector<8x384xf32> to vector<8x256xf32>
    %11 = arith.addf %9, %10 : vector<8x256xf32>
    %12 = arith.negf %11 : vector<8x256xf32>
    %13 = math.exp %12 : vector<8x256xf32>
    %cst_10 = arith.constant 1.000000e+00 : f32
    %14 = vector.broadcast %cst_10 : f32 to vector<8x256xf32>
    %15 = arith.addf %14, %13 : vector<8x256xf32>
    %16 = arith.divf %14, %15 : vector<8x256xf32>
    %17 = vector.extract_strided_slice %16 {offsets = [0, 0], sizes = [8, 128], strides = [1, 1]} : vector<8x256xf32> to vector<8x128xf32>
    %18 = vector.extract_strided_slice %16 {offsets = [0, 128], sizes = [8, 128], strides = [1, 1]} : vector<8x256xf32> to vector<8x128xf32>
    %19 = vector.extract_strided_slice %6 {offsets = [0, 256], sizes = [8, 128], strides = [1, 1]} : vector<8x384xf32> to vector<8x128xf32>
    %20 = vector.extract_strided_slice %8 {offsets = [0, 256], sizes = [8, 128], strides = [1, 1]} : vector<8x384xf32> to vector<8x128xf32>
    %c0_11 = arith.constant 0 : index
    %c0_12 = arith.constant 0 : index
    %21 = vector.load %arg6[%c0_11, %c0_12] : memref<1x128xf32, #tpu.memory_space<vmem>>, vector<1x128xf32>
    %22 = vector.broadcast %21 : vector<1x128xf32> to vector<8x128xf32>
    %23 = arith.addf %20, %22 : vector<8x128xf32>
    %24 = arith.mulf %17, %23 : vector<8x128xf32>
    %25 = arith.addf %19, %24 : vector<8x128xf32>
    %26 = math.tanh %25 : vector<8x128xf32>
    %27 = arith.subf %0, %26 : vector<8x128xf32>
    %28 = arith.mulf %18, %27 : vector<8x128xf32>
    %29 = arith.addf %26, %28 : vector<8x128xf32>
    %c0_13 = arith.constant 0 : index
    %c0_14 = arith.constant 0 : index
    %30 = vector.load %arg7[%c0_13, %c0_14] : memref<8x128xf32, #tpu.memory_space<vmem>>, vector<8x128xf32>
    tpu.vector_store %arg7[%c0_13, %c0_14], %29 {strides = array<i32>} : memref<8x128xf32, #tpu.memory_space<vmem>>, vector<8x128xf32>,
    return
  }
  func.func @transform_0(%arg0: i32) -> (i32, i32) {
    %c0_i32 = arith.constant 0 : i32
    %c0_i32_0 = arith.constant 0 : i32
    return %arg0, %c0_i32 : i32, i32
  }
  func.func @transform_1(%arg0: i32) -> (i32, i32) {
    %c0_i32 = arith.constant 0 : i32
    %c0_i32_0 = arith.constant 0 : i32
    return %arg0, %c0_i32 : i32, i32
  }
  func.func @transform_2(%arg0: i32) -> (i32, i32) {
    %c0_i32 = arith.constant 0 : i32
    %c0_i32_0 = arith.constant 0 : i32
    %c0_i32_1 = arith.constant 0 : i32
    return %c0_i32, %c0_i32_0 : i32, i32
  }
  func.func @transform_3(%arg0: i32) -> (i32, i32) {
    %c0_i32 = arith.constant 0 : i32
    %c0_i32_0 = arith.constant 0 : i32
    %c0_i32_1 = arith.constant 0 : i32
    return %c0_i32, %c0_i32_0 : i32, i32
  }
  func.func @transform_4(%arg0: i32) -> (i32, i32) {
    %c0_i32 = arith.constant 0 : i32
    %c0_i32_0 = arith.constant 0 : i32
    %c0_i32_1 = arith.constant 0 : i32
    return %c0_i32, %c0_i32_0 : i32, i32
  }
  func.func @transform_5(%arg0: i32) -> (i32, i32) {
    %c0_i32 = arith.constant 0 : i32
    %c0_i32_0 = arith.constant 0 : i32
    %c0_i32_1 = arith.constant 0 : i32
    return %c0_i32, %c0_i32_0 : i32, i32
  }
  func.func @transform_6(%arg0: i32) -> (i32, i32) {
    %c0_i32 = arith.constant 0 : i32
    %c0_i32_0 = arith.constant 0 : i32
    return %arg0, %c0_i32 : i32, i32
  }
}

</mosaic_0001>

<llo_original>
// kernel: tpu_custom_call.1
$region0: #{tpu_custom_call.1}
  #allocation0 [shape = 'u32[]', space=smem, size = 0x4, offset = 0x4, fixed_abs, tag = 'smem constant byte address 0x4 - core index']
  #allocation1 [shape = 'u32[72,128]{1,0:T(1,128)}', space=vmem, size = 0x9000, scoped, tag = 'internal scratch']
  %s0 = inlined_call_operand.vmem [shape: f32[8,16], index: 0, kind: input, shape index: {}]
  %s1 = inlined_call_operand.hbm [shape: f32[8,128], index: 1, kind: input, shape index: {}, may-alias: {1,6}]
  %s2 = inlined_call_operand.hbm [shape: f32[16,384], index: 2, kind: input, shape index: {}]
  %s3 = inlined_call_operand.hbm [shape: f32[128,384], index: 3, kind: input, shape index: {}]
  %s4 = inlined_call_operand.vmem [shape: f32[1,384], index: 4, kind: input, shape index: {}]
  %s5 = inlined_call_operand.vmem [shape: f32[1,128], index: 5, kind: input, shape index: {}]
  %s6 = inlined_call_operand.hbm [shape: f32[8,128], index: 6, kind: output, shape index: {}, may-alias: {1,6}]
  %s7 = sld [smem:[#allocation0]]
  $region46: #{tpu_custom_call.1} parent=0
    _
  %s9 = ssub.s32 1, %s7
  %s10 = scalar_select 0, %s9, %s7
  $region1: #{tpu_custom_call.1} parent=0
    #allocation2 [shape = 'u8[4096]{0}', space=vmem, size = 0x1000, scoped, tag = 'input window, operand 1, single buffered']
    #allocation3 [shape = 's32[1]{0}', space=sflag, size = 0x4, scoped, tag = 'scoped memory for tpu_custom_call.1']
    #allocation4 [shape = 's32[1]{0}', space=sflag, size = 0x4, scoped, tag = 'scoped memory for tpu_custom_call.1']
    #allocation5 [shape = 'u8[24576]{0}', space=vmem, size = 0x6000, scoped, tag = 'input window, operand 2, single buffered']
    #allocation6 [shape = 's32[1]{0}', space=sflag, size = 0x4, scoped, tag = 'scoped memory for tpu_custom_call.1']
    #allocation7 [shape = 'u8[196608]{0}', space=vmem, size = 0x30000, scoped, tag = 'input window, operand 3, single buffered']
    #allocation8 [shape = 'u8[4096]{0}', space=vmem, size = 0x1000, scoped, tag = 'output window, operand 0, single buffered']
    %11 = vsyncpa [#allocation3], 0
    %12 = vsyncpa [#allocation6], 0
    %13 = vsyncpa [#allocation4], 0
    // Predicated region
    $region2: #{tpu_custom_call.1} parent=1 // pred_check
      _
    $region3: #{tpu_custom_call.1} parent=1 // pred_check_branch
      %15 = sbr.rel (0) target = $region5
    $region4: #{tpu_custom_call.1} parent=1 // pred_region
      _
    $region5: #{tpu_custom_call.1} parent=1 // pred_fallthru
      _
    // Predicated region
    $region6: #{tpu_custom_call.1} parent=1 // pred_check
      _
    $region7: #{tpu_custom_call.1} parent=1 // pred_check_branch
      %17 = sbr.rel (0) target = $region9
    $region8: #{tpu_custom_call.1} parent=1 // pred_region
      %19 = vsyncadd [#allocation3], 0
      %s21 = sshll.u32 %s1, 4
      %s22 = int_to_ptr.hbm [resolvable:$true] %s21
      %s23 = sshll.u32 [#allocation2], 4
      %s24 = int_to_ptr.vmem [resolvable:$true] %s23
      %26 = dma.hbm_to_vmem [thread:$0]  %s22, 128, %s24, [#allocation3]
    $region9: #{tpu_custom_call.1} parent=1 // pred_fallthru
      _
    // Predicated region
    $region10: #{tpu_custom_call.1} parent=1 // pred_check
      _
    $region11: #{tpu_custom_call.1} parent=1 // pred_check_branch
      %28 = sbr.rel (0) target = $region13
    $region12: #{tpu_custom_call.1} parent=1 // pred_region
      %30 = vsyncadd [#allocation6], 0
      %s31 = sshll.u32 %s2, 4
      %s32 = int_to_ptr.hbm [resolvable:$true] %s31
      %s33 = sshll.u32 [#allocation5], 4
      %s34 = int_to_ptr.vmem [resolvable:$true] %s33
      %39 = dma.hbm_to_vmem [thread:$0]  %s32, 768, %s34, [#allocation6], 384, 384, 24
    $region13: #{tpu_custom_call.1} parent=1 // pred_fallthru
      _
    // Predicated region
    $region14: #{tpu_custom_call.1} parent=1 // pred_check
      _
    $region15: #{tpu_custom_call.1} parent=1 // pred_check_branch
      %41 = sbr.rel (0) target = $region17
    $region16: #{tpu_custom_call.1} parent=1 // pred_region
      %43 = vsyncadd [#allocation6], 0
      %s44 = sshll.u32 %s3, 4
      %s45 = int_to_ptr.hbm [resolvable:$true] %s44
      %s46 = sshll.u32 [#allocation7], 4
      %s47 = int_to_ptr.vmem [resolvable:$true] %s46
      %52 = dma.hbm_to_vmem [thread:$0]  %s45, 6144, %s47, [#allocation6], 384, 384, 24
    $region17: #{tpu_custom_call.1} parent=1 // pred_fallthru
      _
    // Predicated region
    $region18: #{tpu_custom_call.1} parent=1 // pred_check
      _
    $region19: #{tpu_custom_call.1} parent=1 // pred_check_branch
      %54 = sbr.rel (0) target = $region21
    $region20: #{tpu_custom_call.1} parent=1 // pred_region
      _
    $region21: #{tpu_custom_call.1} parent=1 // pred_fallthru
      _
    // Predicated region
    $region22: #{tpu_custom_call.1} parent=1 // pred_check
      _
    $region23: #{tpu_custom_call.1} parent=1 // pred_check_branch
      %56 = sbr.rel (0) target = $region25
    $region24: #{tpu_custom_call.1} parent=1 // pred_region
      _
    $region25: #{tpu_custom_call.1} parent=1 // pred_fallthru
      _
    // Predicated region
    $region26: #{tpu_custom_call.1} parent=1 // pred_check
      _
    $region27: #{tpu_custom_call.1} parent=1 // pred_check_branch
      %58 = sbr.rel (0) target = $region29
    $region28: #{tpu_custom_call.1} parent=1 // pred_region
      %60 = dma.done [#allocation3], 128
    $region29: #{tpu_custom_call.1} parent=1 // pred_fallthru
      _
    // Predicated region
    $region30: #{tpu_custom_call.1} parent=1 // pred_check
      _
    $region31: #{tpu_custom_call.1} parent=1 // pred_check_branch
      %62 = sbr.rel (0) target = $region33
    $region32: #{tpu_custom_call.1} parent=1 // pred_region
      %64 = dma.done [#allocation6], 768
    $region33: #{tpu_custom_call.1} parent=1 // pred_fallthru
      _
    // Predicated region
    $region34: #{tpu_custom_call.1} parent=1 // pred_check
      _
    $region35: #{tpu_custom_call.1} parent=1 // pred_check_branch
      %66 = sbr.rel (0) target = $region37
    $region36: #{tpu_custom_call.1} parent=1 // pred_region
      %68 = dma.done [#allocation6], 6144
    $region37: #{tpu_custom_call.1} parent=1 // pred_fallthru
      _
    %v69 = vld [vmem:[#allocation2] sm:$0xff]
    %v70 = vld [vmem:[%s0] sm:$0xff]
    %v71 = vld [vmem:[#allocation5] sm:$0xff]
    %v72 = vld [vmem:[#allocation5 + $0x8] sm:$0xff]
    %v73 = vld [vmem:[#allocation5 + $0x10] sm:$0xff]
    %v74 = vld [vmem:[#allocation5 + $0x18] sm:$0xff]
    %v75 = vld [vmem:[#allocation5 + $0x20] sm:$0xff]
    %v76 = vld [vmem:[#allocation5 + $0x28] sm:$0xff]
    %v77 = vld [vmem:[%s4] sm:$0x7]
    %v79 = vperm.slane %v77, 0
    %v80 = vperm.slane %v77, 1
    %v81 = vperm.slane %v77, 2
    %vm85 = vcmask 130048
    %v87 = vsel %vm85, %v70, 0
    %89 = vmatpush.msra.mxu0 0.0
    %90 = vmatpush.msra.mxu0 0.0
    %91 = vmatpush.msra.mxu0 0.0
    %92 = vmatpush.msra.mxu0 0.0
    %93 = vmatpush.msra.mxu0 0.0
    %94 = vmatpush.msra.mxu0 0.0
    %95 = vmatpush.msra.mxu0 0.0
    %96 = vmatpush.msra.mxu0 0.0
    %97 = vmatpush.msra.mxu0 0.0
    %98 = vmatpush.msra.mxu0 0.0
    %99 = vmatpush.msra.mxu0 0.0
    %100 = vmatpush.msra.mxu0 0.0
    %101 = vmatpush.msra.mxu0 0.0
    %102 = vmatpush.msra.mxu0 0.0
    %103 = vmatpush.msra.mxu0 %v74
    %104 = vmatpush.msra.mxu0 %v71
    %105 = vmatmul.f32.gmra.mxu0 %v87
    %v106 = vpop.f32.mrf.mxu0
    %v107 = vadd.f32 %v79, %v106
    %108 = vdwg.mxu0
    %109 = vmatpush.msra.mxu0 0.0
    %110 = vmatpush.msra.mxu0 0.0
    %111 = vmatpush.msra.mxu0 0.0
    %112 = vmatpush.msra.mxu0 0.0
    %113 = vmatpush.msra.mxu0 0.0
    %114 = vmatpush.msra.mxu0 0.0
    %115 = vmatpush.msra.mxu0 0.0
    %116 = vmatpush.msra.mxu0 0.0
    %117 = vmatpush.msra.mxu0 0.0
    %118 = vmatpush.msra.mxu0 0.0
    %119 = vmatpush.msra.mxu0 0.0
    %120 = vmatpush.msra.mxu0 0.0
    %121 = vmatpush.msra.mxu0 0.0
    %122 = vmatpush.msra.mxu0 0.0
    %123 = vmatpush.msra.mxu0 %v75
    %124 = vmatpush.msra.mxu0 %v72
    %125 = vmatmul.f32.gmra.mxu0 %v87
    %v126 = vpop.f32.mrf.mxu0
    %v127 = vadd.f32 %v80, %v126
    %128 = vdwg.mxu0
    %129 = vmatpush.msra.mxu0 0.0
    %130 = vmatpush.msra.mxu0 0.0
    %131 = vmatpush.msra.mxu0 0.0
    %132 = vmatpush.msra.mxu0 0.0
    %133 = vmatpush.msra.mxu0 0.0
    %134 = vmatpush.msra.mxu0 0.0
    %135 = vmatpush.msra.mxu0 0.0
    %136 = vmatpush.msra.mxu0 0.0
    %137 = vmatpush.msra.mxu0 0.0
    %138 = vmatpush.msra.mxu0 0.0
    %139 = vmatpush.msra.mxu0 0.0
    %140 = vmatpush.msra.mxu0 0.0
    %141 = vmatpush.msra.mxu0 0.0
    %142 = vmatpush.msra.mxu0 0.0
    %143 = vmatpush.msra.mxu0 %v76
    %144 = vmatpush.msra.mxu0 %v73
    %145 = vmatmul.f32.gmra.mxu0 %v87
    %v146 = vpop.f32.mrf.mxu0
    %v147 = vadd.f32 %v81, %v146
    %148 = vdwg.mxu0
    %v149 = vld [vmem:[#allocation7] sm:$0xff]
    %v150 = vld [vmem:[#allocation7 + $0x8] sm:$0xff]
    %v151 = vld [vmem:[#allocation7 + $0x10] sm:$0xff]
    %v152 = vld [vmem:[#allocation7 + $0x18] sm:$0xff]
    %v153 = vld [vmem:[#allocation7 + $0x20] sm:$0xff]
    %v154 = vld [vmem:[#allocation7 + $0x28] sm:$0xff]
    %v155 = vld [vmem:[#allocation7 + $0x30] sm:$0xff]
    %v156 = vld [vmem:[#allocation7 + $0x38] sm:$0xff]
    %v157 = vld [vmem:[#allocation7 + $0x40] sm:$0xff]
    %v158 = vld [vmem:[#allocation7 + $0x48] sm:$0xff]
    %v159 = vld [vmem:[#allocation7 + $0x50] sm:$0xff]
    %v160 = vld [vmem:[#allocation7 + $0x58] sm:$0xff]
    %v161 = vld [vmem:[#allocation7 + $0x60] sm:$0xff]
    %v162 = vld [vmem:[#allocation7 + $0x68] sm:$0xff]
    %v163 = vld [vmem:[#allocation7 + $0x70] sm:$0xff]
    %v164 = vld [vmem:[#allocation7 + $0x78] sm:$0xff]
    %v165 = vld [vmem:[#allocation7 + $0x80] sm:$0xff]
    %v166 = vld [vmem:[#allocation7 + $0x88] sm:$0xff]
    %v167 = vld [vmem:[#allocation7 + $0x90] sm:$0xff]
    %v168 = vld [vmem:[#allocation7 + $0x98] sm:$0xff]
    %v169 = vld [vmem:[#allocation7 + $0xa0] sm:$0xff]
    %v170 = vld [vmem:[#allocation7 + $0xa8] sm:$0xff]
    %v171 = vld [vmem:[#allocation7 + $0xb0] sm:$0xff]
    %v172 = vld [vmem:[#allocation7 + $0xb8] sm:$0xff]
    %v173 = vld [vmem:[#allocation7 + $0xc0] sm:$0xff]
    %v174 = vld [vmem:[#allocation7 + $0xc8] sm:$0xff]
    %v175 = vld [vmem:[#allocation7 + $0xd0] sm:$0xff]
    %v176 = vld [vmem:[#allocation7 + $0xd8] sm:$0xff]
    %v177 = vld [vmem:[#allocation7 + $0xe0] sm:$0xff]
    %v178 = vld [vmem:[#allocation7 + $0xe8] sm:$0xff]
    %v179 = vld [vmem:[#allocation7 + $0xf0] sm:$0xff]
    %v180 = vld [vmem:[#allocation7 + $0xf8] sm:$0xff]
    %v181 = vld [vmem:[#allocation7 + $0x100] sm:$0xff]
    %v182 = vld [vmem:[#allocation7 + $0x108] sm:$0xff]
    %v183 = vld [vmem:[#allocation7 + $0x110] sm:$0xff]
    %v184 = vld [vmem:[#allocation7 + $0x118] sm:$0xff]
    %v185 = vld [vmem:[#allocation7 + $0x120] sm:$0xff]
    %v186 = vld [vmem:[#allocation7 + $0x128] sm:$0xff]
    %v187 = vld [vmem:[#allocation7 + $0x130] sm:$0xff]
    %v188 = vld [vmem:[#allocation7 + $0x138] sm:$0xff]
    %v189 = vld [vmem:[#allocation7 + $0x140] sm:$0xff]
    %v190 = vld [vmem:[#allocation7 + $0x148] sm:$0xff]
    %v191 = vld [vmem:[#allocation7 + $0x150] sm:$0xff]
    %v192 = vld [vmem:[#allocation7 + $0x158] sm:$0xff]
    %v193 = vld [vmem:[#allocation7 + $0x160] sm:$0xff]
    %v194 = vld [vmem:[#allocation7 + $0x168] sm:$0xff]
    %v195 = vld [vmem:[#allocation7 + $0x170] sm:$0xff]
    %v196 = vld [vmem:[#allocation7 + $0x178] sm:$0xff]
    %197 = vmatpush.msra.mxu0 %v194
    %198 = vmatpush.msra.mxu0 %v191
    %199 = vmatpush.msra.mxu0 %v188
    %200 = vmatpush.msra.mxu0 %v185
    %201 = vmatpush.msra.mxu0 %v182
    %202 = vmatpush.msra.mxu0 %v179
    %203 = vmatpush.msra.mxu0 %v176
    %204 = vmatpush.msra.mxu0 %v173
    %205 = vmatpush.msra.mxu0 %v170
    %206 = vmatpush.msra.mxu0 %v167
    %207 = vmatpush.msra.mxu0 %v164
    %208 = vmatpush.msra.mxu0 %v161
    %209 = vmatpush.msra.mxu0 %v158
    %210 = vmatpush.msra.mxu0 %v155
    %211 = vmatpush.msra.mxu0 %v152
    %212 = vmatpush.msra.mxu0 %v149
    %213 = vmatmul.f32.gmra.mxu0 %v69
    %v214 = vpop.f32.mrf.mxu0
    %v215 = vadd.f32 0.0, %v214
    %216 = vdwg.mxu0
    %217 = vmatpush.msra.mxu0 %v195
    %218 = vmatpush.msra.mxu0 %v192
    %219 = vmatpush.msra.mxu0 %v189
    %220 = vmatpush.msra.mxu0 %v186
    %221 = vmatpush.msra.mxu0 %v183
    %222 = vmatpush.msra.mxu0 %v180
    %223 = vmatpush.msra.mxu0 %v177
    %224 = vmatpush.msra.mxu0 %v174
    %225 = vmatpush.msra.mxu0 %v171
    %226 = vmatpush.msra.mxu0 %v168
    %227 = vmatpush.msra.mxu0 %v165
    %228 = vmatpush.msra.mxu0 %v162
    %229 = vmatpush.msra.mxu0 %v159
    %230 = vmatpush.msra.mxu0 %v156
    %231 = vmatpush.msra.mxu0 %v153
    %232 = vmatpush.msra.mxu0 %v150
    %233 = vmatmul.f32.gmra.mxu0 %v69
    %v234 = vpop.f32.mrf.mxu0
    %v235 = vadd.f32 0.0, %v234
    %236 = vdwg.mxu0
    %237 = vmatpush.msra.mxu0 %v196
    %238 = vmatpush.msra.mxu0 %v193
    %239 = vmatpush.msra.mxu0 %v190
    %240 = vmatpush.msra.mxu0 %v187
    %241 = vmatpush.msra.mxu0 %v184
    %242 = vmatpush.msra.mxu0 %v181
    %243 = vmatpush.msra.mxu0 %v178
    %244 = vmatpush.msra.mxu0 %v175
    %245 = vmatpush.msra.mxu0 %v172
    %246 = vmatpush.msra.mxu0 %v169
    %247 = vmatpush.msra.mxu0 %v166
    %248 = vmatpush.msra.mxu0 %v163
    %249 = vmatpush.msra.mxu0 %v160
    %250 = vmatpush.msra.mxu0 %v157
    %251 = vmatpush.msra.mxu0 %v154
    %252 = vmatpush.msra.mxu0 %v151
    %253 = vmatmul.f32.gmra.mxu0 %v69
    %v254 = vpop.f32.mrf.mxu0
    %v255 = vadd.f32 0.0, %v254
    %256 = vdwg.mxu0
    %v257 = vadd.f32 %v107, %v215
    %v258 = vadd.f32 %v127, %v235
    %v259 = vxor.u32 %v257, 2147483648
    %v260 = vxor.u32 %v258, 2147483648
    %v261 = vmul.f32 %v259, 1.442695
    %v262 = vpow.pop %v261
    %v263 = vmul.f32 %v260, 1.442695
    %v264 = vpow.pop %v263
    %v265 = vadd.f32 %v262, 1.0
    %v266 = vadd.f32 %v264, 1.0
    %v267 = vrcp.pop %v265
    %v268 = vmul.f32 %v265, %v267
    %v269 = vsub.f32 1.0, %v268
    %v270 = vmul.f32 %v267, %v269
    %v271 = vadd.f32 %v267, %v270
    %vm272 = vweird.f32 %v265
    %vm273 = vweird.f32 %v267
    %vm274 = vmor %vm272, %vm273
    %v275 = vsel %vm274, %v267, %v271
    %v276 = vand.u32 2147483647, %v265
    %vm277 = vcmp.eq.f32.partialorder %v276, 8.507059e+37
    %v278 = vand.u32 %v265, 2147483648
    %v279 = vor.u32 1.1754944e-38, %v278
    %v280 = vsel %vm277, %v279, %v275
    %v281 = vmul.f32 1.0, %v280
    %v282 = vrcp.pop %v266
    %v283 = vmul.f32 %v266, %v282
    %v284 = vsub.f32 1.0, %v283
    %v285 = vmul.f32 %v282, %v284
    %v286 = vadd.f32 %v282, %v285
    %vm287 = vweird.f32 %v266
    %vm288 = vweird.f32 %v282
    %vm289 = vmor %vm287, %vm288
    %v290 = vsel %vm289, %v282, %v286
    %v291 = vand.u32 2147483647, %v266
    %vm292 = vcmp.eq.f32.partialorder %v291, 8.507059e+37
    %v293 = vand.u32 %v266, 2147483648
    %v294 = vor.u32 1.1754944e-38, %v293
    %v295 = vsel %vm292, %v294, %v290
    %v296 = vmul.f32 1.0, %v295
    %v297 = vld [vmem:[%s5] sm:$0x1]
    %v299 = vperm.slane %v297, 0
    %v301 = vadd.f32 %v255, %v299
    %v302 = vmul.f32 %v281, %v301
    %v303 = vadd.f32 %v147, %v302
    %v304 = vtanh.pop %v303
    %v305 = vsub.f32 %v69, %v304
    %v306 = vmul.f32 %v296, %v305
    %v307 = vadd.f32 %v304, %v306
    %308 = vst [vmem:[#allocation8] sm:$0xff] %v307
    // Predicated region
    $region38: #{tpu_custom_call.1} parent=1 // pred_check
      _
    $region39: #{tpu_custom_call.1} parent=1 // pred_check_branch
      %310 = sbr.rel (0) target = $region41
    $region40: #{tpu_custom_call.1} parent=1 // pred_region
      %312 = vsyncadd [#allocation4], 0
      %s314 = sshll.u32 [#allocation8], 4
      %s315 = int_to_ptr.vmem [resolvable:$true] %s314
      %s316 = sshll.u32 %s6, 4
      %s317 = int_to_ptr.hbm [resolvable:$true] %s316
      %319 = dma.vmem_to_hbm [thread:$0]  %s315, 128, %s317, [#allocation4]
    $region41: #{tpu_custom_call.1} parent=1 // pred_fallthru
      _
    // Predicated region
    $region42: #{tpu_custom_call.1} parent=1 // pred_check
      _
    $region43: #{tpu_custom_call.1} parent=1 // pred_check_branch
      %321 = sbr.rel (0) target = $region45
    $region44: #{tpu_custom_call.1} parent=1 // pred_region
      %323 = dma.done [#allocation4], 128
    $region45: #{tpu_custom_call.1} parent=1 // pred_fallthru
      _
    %324 = vsyncpa [#allocation3], 1
    %325 = vsyncpa [#allocation6], 1
    %326 = vsyncpa [#allocation4], 1

// kernel: tpu_custom_call.1
$region0: #{tpu_custom_call.1}
  #allocation0 [shape = 'u32[]', space=smem, size = 0x4, offset = 0x4, fixed_abs, tag = 'smem constant byte address 0x4 - core index']
  #allocation1 [shape = 'u32[72,128]{1,0:T(1,128)}', space=vmem, size = 0x9000, scoped, tag = 'internal scratch']
  %s0 = inlined_call_operand.vmem [shape: f32[8,16], index: 0, kind: input, shape index: {}]
  %s1 = inlined_call_operand.hbm [shape: f32[8,128], index: 1, kind: input, shape index: {}, may-alias: {1,6}]
  %s2 = inlined_call_operand.hbm [shape: f32[16,384], index: 2, kind: input, shape index: {}]
  %s3 = inlined_call_operand.hbm [shape: f32[128,384], index: 3, kind: input, shape index: {}]
  %s4 = inlined_call_operand.vmem [shape: f32[1,384], index: 4, kind: input, shape index: {}]
  %s5 = inlined_call_operand.vmem [shape: f32[1,128], index: 5, kind: input, shape index: {}]
  %s6 = inlined_call_operand.hbm [shape: f32[8,128], index: 6, kind: output, shape index: {}, may-alias: {1,6}]
  %s7 = sld [smem:[#allocation0]]
  $region46: #{tpu_custom_call.1} parent=0
    _
  %s9 = ssub.s32 1, %s7
  %s10 = scalar_select 0, %s9, %s7
  $region1: #{tpu_custom_call.1} parent=0
    #allocation2 [shape = 'u8[4096]{0}', space=vmem, size = 0x1000, scoped, tag = 'input window, operand 1, single buffered']
    #allocation3 [shape = 's32[1]{0}', space=sflag, size = 0x4, scoped, tag = 'scoped memory for tpu_custom_call.1']
    #allocation4 [shape = 's32[1]{0}', space=sflag, size = 0x4, scoped, tag = 'scoped memory for tpu_custom_call.1']
    #allocation5 [shape = 'u8[24576]{0}', space=vmem, size = 0x6000, scoped, tag = 'input window, operand 2, single buffered']
    #allocation6 [shape = 's32[1]{0}', space=sflag, size = 0x4, scoped, tag = 'scoped memory for tpu_custom_call.1']
    #allocation7 [shape = 'u8[196608]{0}', space=vmem, size = 0x30000, scoped, tag = 'input window, operand 3, single buffered']
    #allocation8 [shape = 'u8[4096]{0}', space=vmem, size = 0x1000, scoped, tag = 'output window, operand 0, single buffered']
    %11 = vsyncpa [#allocation3], 0
    %12 = vsyncpa [#allocation6], 0
    %13 = vsyncpa [#allocation4], 0
    // Predicated region
    $region2: #{tpu_custom_call.1} parent=1 // pred_check
      _
    $region3: #{tpu_custom_call.1} parent=1 // pred_check_branch
      %15 = sbr.rel (0) target = $region5
    $region4: #{tpu_custom_call.1} parent=1 // pred_region
      _
    $region5: #{tpu_custom_call.1} parent=1 // pred_fallthru
      _
    // Predicated region
    $region6: #{tpu_custom_call.1} parent=1 // pred_check
      _
    $region7: #{tpu_custom_call.1} parent=1 // pred_check_branch
      %17 = sbr.rel (0) target = $region9
    $region8: #{tpu_custom_call.1} parent=1 // pred_region
      %19 = vsyncadd [#allocation3], 0
      %s21 = sshll.u32 %s1, 4
      %s22 = int_to_ptr.hbm [resolvable:$true] %s21
      %s23 = sshll.u32 [#allocation2], 4
      %s24 = int_to_ptr.vmem [resolvable:$true] %s23
      %26 = dma.hbm_to_vmem [thread:$0]  %s22, 128, %s24, [#allocation3]
    $region9: #{tpu_custom_call.1} parent=1 // pred_fallthru
      _
    // Predicated region
    $region10: #{tpu_custom_call.1} parent=1 // pred_check
      _
    $region11: #{tpu_custom_call.1} parent=1 // pred_check_branch
      %28 = sbr.rel (0) target = $region13
    $region12: #{tpu_custom_call.1} parent=1 // pred_region
      %30 = vsyncadd [#allocation6], 0
      %s31 = sshll.u32 %s2, 4
      %s32 = int_to_ptr.hbm [resolvable:$true] %s31
      %s33 = sshll.u32 [#allocation5], 4
      %s34 = int_to_ptr.vmem [resolvable:$true] %s33
      %39 = dma.hbm_to_vmem [thread:$0]  %s32, 768, %s34, [#allocation6], 384, 384, 24
    $region13: #{tpu_custom_call.1} parent=1 // pred_fallthru
      _
    // Predicated region
    $region14: #{tpu_custom_call.1} parent=1 // pred_check
      _
    $region15: #{tpu_custom_call.1} parent=1 // pred_check_branch
      %41 = sbr.rel (0) target = $region17
    $region16: #{tpu_custom_call.1} parent=1 // pred_region
      %43 = vsyncadd [#allocation6], 0
      %s44 = sshll.u32 %s3, 4
      %s45 = int_to_ptr.hbm [resolvable:$true] %s44
      %s46 = sshll.u32 [#allocation7], 4
      %s47 = int_to_ptr.vmem [resolvable:$true] %s46
      %52 = dma.hbm_to_vmem [thread:$0]  %s45, 6144, %s47, [#allocation6], 384, 384, 24
    $region17: #{tpu_custom_call.1} parent=1 // pred_fallthru
      _
    // Predicated region
    $region18: #{tpu_custom_call.1} parent=1 // pred_check
      _
    $region19: #{tpu_custom_call.1} parent=1 // pred_check_branch
      %54 = sbr.rel (0) target = $region21
    $region20: #{tpu_custom_call.1} parent=1 // pred_region
      _
    $region21: #{tpu_custom_call.1} parent=1 // pred_fallthru
      _
    // Predicated region
    $region22: #{tpu_custom_call.1} parent=1 // pred_check
      _
    $region23: #{tpu_custom_call.1} parent=1 // pred_check_branch
      %56 = sbr.rel (0) target = $region25
    $region24: #{tpu_custom_call.1} parent=1 // pred_region
      _
    $region25: #{tpu_custom_call.1} parent=1 // pred_fallthru
      _
    // Predicated region
    $region26: #{tpu_custom_call.1} parent=1 // pred_check
      _
    $region27: #{tpu_custom_call.1} parent=1 // pred_check_branch
      %58 = sbr.rel (0) target = $region29
    $region28: #{tpu_custom_call.1} parent=1 // pred_region
      %60 = dma.done [#allocation3], 128
    $region29: #{tpu_custom_call.1} parent=1 // pred_fallthru
      _
    // Predicated region
    $region30: #{tpu_custom_call.1} parent=1 // pred_check
      _
    $region31: #{tpu_custom_call.1} parent=1 // pred_check_branch
      %62 = sbr.rel (0) target = $region33
    $region32: #{tpu_custom_call.1} parent=1 // pred_region
      %64 = dma.done [#allocation6], 768
    $region33: #{tpu_custom_call.1} parent=1 // pred_fallthru
      _
    // Predicated region
    $region34: #{tpu_custom_call.1} parent=1 // pred_check
      _
    $region35: #{tpu_custom_call.1} parent=1 // pred_check_branch
      %66 = sbr.rel (0) target = $region37
    $region36: #{tpu_custom_call.1} parent=1 // pred_region
      %68 = dma.done [#allocation6], 6144
    $region37: #{tpu_custom_call.1} parent=1 // pred_fallthru
      _
    %v69 = vld [vmem:[#allocation2] sm:$0xff]
    %v70 = vld [vmem:[%s0] sm:$0xff]
    %v71 = vld [vmem:[#allocation5] sm:$0xff]
    %v72 = vld [vmem:[#allocation5 + $0x8] sm:$0xff]
    %v73 = vld [vmem:[#allocation5 + $0x10] sm:$0xff]
    %v74 = vld [vmem:[#allocation5 + $0x18] sm:$0xff]
    %v75 = vld [vmem:[#allocation5 + $0x20] sm:$0xff]
    %v76 = vld [vmem:[#allocation5 + $0x28] sm:$0xff]
    %v77 = vld [vmem:[%s4] sm:$0x7]
    %v79 = vperm.slane %v77, 0
    %v80 = vperm.slane %v77, 1
    %v81 = vperm.slane %v77, 2
    %vm85 = vcmask 130048
    %v87 = vsel %vm85, %v70, 0
    %89 = vmatpush.msra.mxu0 0.0
    %90 = vmatpush.msra.mxu0 0.0
    %91 = vmatpush.msra.mxu0 0.0
    %92 = vmatpush.msra.mxu0 0.0
    %93 = vmatpush.msra.mxu0 0.0
    %94 = vmatpush.msra.mxu0 0.0
    %95 = vmatpush.msra.mxu0 0.0
    %96 = vmatpush.msra.mxu0 0.0
    %97 = vmatpush.msra.mxu0 0.0
    %98 = vmatpush.msra.mxu0 0.0
    %99 = vmatpush.msra.mxu0 0.0
    %100 = vmatpush.msra.mxu0 0.0
    %101 = vmatpush.msra.mxu0 0.0
    %102 = vmatpush.msra.mxu0 0.0
    %103 = vmatpush.msra.mxu0 %v74
    %104 = vmatpush.msra.mxu0 %v71
    %105 = vmatmul.f32.gmra.mxu0 %v87
    %v106 = vpop.f32.mrf.mxu0
    %v107 = vadd.f32 %v79, %v106
    %108 = vdwg.mxu0
    %109 = vmatpush.msra.mxu0 0.0
    %110 = vmatpush.msra.mxu0 0.0
    %111 = vmatpush.msra.mxu0 0.0
    %112 = vmatpush.msra.mxu0 0.0
    %113 = vmatpush.msra.mxu0 0.0
    %114 = vmatpush.msra.mxu0 0.0
    %115 = vmatpush.msra.mxu0 0.0
    %116 = vmatpush.msra.mxu0 0.0
    %117 = vmatpush.msra.mxu0 0.0
    %118 = vmatpush.msra.mxu0 0.0
    %119 = vmatpush.msra.mxu0 0.0
    %120 = vmatpush.msra.mxu0 0.0
    %121 = vmatpush.msra.mxu0 0.0
    %122 = vmatpush.msra.mxu0 0.0
    %123 = vmatpush.msra.mxu0 %v75
    %124 = vmatpush.msra.mxu0 %v72
    %125 = vmatmul.f32.gmra.mxu0 %v87
    %v126 = vpop.f32.mrf.mxu0
    %v127 = vadd.f32 %v80, %v126
    %128 = vdwg.mxu0
    %129 = vmatpush.msra.mxu0 0.0
    %130 = vmatpush.msra.mxu0 0.0
    %131 = vmatpush.msra.mxu0 0.0
    %132 = vmatpush.msra.mxu0 0.0
    %133 = vmatpush.msra.mxu0 0.0
    %134 = vmatpush.msra.mxu0 0.0
    %135 = vmatpush.msra.mxu0 0.0
    %136 = vmatpush.msra.mxu0 0.0
    %137 = vmatpush.msra.mxu0 0.0
    %138 = vmatpush.msra.mxu0 0.0
    %139 = vmatpush.msra.mxu0 0.0
    %140 = vmatpush.msra.mxu0 0.0
    %141 = vmatpush.msra.mxu0 0.0
    %142 = vmatpush.msra.mxu0 0.0
    %143 = vmatpush.msra.mxu0 %v76
    %144 = vmatpush.msra.mxu0 %v73
    %145 = vmatmul.f32.gmra.mxu0 %v87
    %v146 = vpop.f32.mrf.mxu0
    %v147 = vadd.f32 %v81, %v146
    %148 = vdwg.mxu0
    %v149 = vld [vmem:[#allocation7] sm:$0xff]
    %v150 = vld [vmem:[#allocation7 + $0x8] sm:$0xff]
    %v151 = vld [vmem:[#allocation7 + $0x10] sm:$0xff]
    %v152 = vld [vmem:[#allocation7 + $0x18] sm:$0xff]
    %v153 = vld [vmem:[#allocation7 + $0x20] sm:$0xff]
    %v154 = vld [vmem:[#allocation7 + $0x28] sm:$0xff]
    %v155 = vld [vmem:[#allocation7 + $0x30] sm:$0xff]
    %v156 = vld [vmem:[#allocation7 + $0x38] sm:$0xff]
    %v157 = vld [vmem:[#allocation7 + $0x40] sm:$0xff]
    %v158 = vld [vmem:[#allocation7 + $0x48] sm:$0xff]
    %v159 = vld [vmem:[#allocation7 + $0x50] sm:$0xff]
    %v160 = vld [vmem:[#allocation7 + $0x58] sm:$0xff]
    %v161 = vld [vmem:[#allocation7 + $0x60] sm:$0xff]
    %v162 = vld [vmem:[#allocation7 + $0x68] sm:$0xff]
    %v163 = vld [vmem:[#allocation7 + $0x70] sm:$0xff]
    %v164 = vld [vmem:[#allocation7 + $0x78] sm:$0xff]
    %v165 = vld [vmem:[#allocation7 + $0x80] sm:$0xff]
    %v166 = vld [vmem:[#allocation7 + $0x88] sm:$0xff]
    %v167 = vld [vmem:[#allocation7 + $0x90] sm:$0xff]
    %v168 = vld [vmem:[#allocation7 + $0x98] sm:$0xff]
    %v169 = vld [vmem:[#allocation7 + $0xa0] sm:$0xff]
    %v170 = vld [vmem:[#allocation7 + $0xa8] sm:$0xff]
    %v171 = vld [vmem:[#allocation7 + $0xb0] sm:$0xff]
    %v172 = vld [vmem:[#allocation7 + $0xb8] sm:$0xff]
    %v173 = vld [vmem:[#allocation7 + $0xc0] sm:$0xff]
    %v174 = vld [vmem:[#allocation7 + $0xc8] sm:$0xff]
    %v175 = vld [vmem:[#allocation7 + $0xd0] sm:$0xff]
    %v176 = vld [vmem:[#allocation7 + $0xd8] sm:$0xff]
    %v177 = vld [vmem:[#allocation7 + $0xe0] sm:$0xff]
    %v178 = vld [vmem:[#allocation7 + $0xe8] sm:$0xff]
    %v179 = vld [vmem:[#allocation7 + $0xf0] sm:$0xff]
    %v180 = vld [vmem:[#allocation7 + $0xf8] sm:$0xff]
    %v181 = vld [vmem:[#allocation7 + $0x100] sm:$0xff]
    %v182 = vld [vmem:[#allocation7 + $0x108] sm:$0xff]
    %v183 = vld [vmem:[#allocation7 + $0x110] sm:$0xff]
    %v184 = vld [vmem:[#allocation7 + $0x118] sm:$0xff]
    %v185 = vld [vmem:[#allocation7 + $0x120] sm:$0xff]
    %v186 = vld [vmem:[#allocation7 + $0x128] sm:$0xff]
    %v187 = vld [vmem:[#allocation7 + $0x130] sm:$0xff]
    %v188 = vld [vmem:[#allocation7 + $0x138] sm:$0xff]
    %v189 = vld [vmem:[#allocation7 + $0x140] sm:$0xff]
    %v190 = vld [vmem:[#allocation7 + $0x148] sm:$0xff]
    %v191 = vld [vmem:[#allocation7 + $0x150] sm:$0xff]
    %v192 = vld [vmem:[#allocation7 + $0x158] sm:$0xff]
    %v193 = vld [vmem:[#allocation7 + $0x160] sm:$0xff]
    %v194 = vld [vmem:[#allocation7 + $0x168] sm:$0xff]
    %v195 = vld [vmem:[#allocation7 + $0x170] sm:$0xff]
    %v196 = vld [vmem:[#allocation7 + $0x178] sm:$0xff]
    %197 = vmatpush.msra.mxu0 %v194
    %198 = vmatpush.msra.mxu0 %v191
    %199 = vmatpush.msra.mxu0 %v188
    %200 = vmatpush.msra.mxu0 %v185
    %201 = vmatpush.msra.mxu0 %v182
    %202 = vmatpush.msra.mxu0 %v179
    %203 = vmatpush.msra.mxu0 %v176
    %204 = vmatpush.msra.mxu0 %v173
    %205 = vmatpush.msra.mxu0 %v170
    %206 = vmatpush.msra.mxu0 %v167
    %207 = vmatpush.msra.mxu0 %v164
    %208 = vmatpush.msra.mxu0 %v161
    %209 = vmatpush.msra.mxu0 %v158
    %210 = vmatpush.msra.mxu0 %v155
    %211 = vmatpush.msra.mxu0 %v152
    %212 = vmatpush.msra.mxu0 %v149
    %213 = vmatmul.f32.gmra.mxu0 %v69
    %v214 = vpop.f32.mrf.mxu0
    %v215 = vadd.f32 0.0, %v214
    %216 = vdwg.mxu0
    %217 = vmatpush.msra.mxu0 %v195
    %218 = vmatpush.msra.mxu0 %v192
    %219 = vmatpush.msra.mxu0 %v189
    %220 = vmatpush.msra.mxu0 %v186
    %221 = vmatpush.msra.mxu0 %v183
    %222 = vmatpush.msra.mxu0 %v180
    %223 = vmatpush.msra.mxu0 %v177
    %224 = vmatpush.msra.mxu0 %v174
    %225 = vmatpush.msra.mxu0 %v171
    %226 = vmatpush.msra.mxu0 %v168
    %227 = vmatpush.msra.mxu0 %v165
    %228 = vmatpush.msra.mxu0 %v162
    %229 = vmatpush.msra.mxu0 %v159
    %230 = vmatpush.msra.mxu0 %v156
    %231 = vmatpush.msra.mxu0 %v153
    %232 = vmatpush.msra.mxu0 %v150
    %233 = vmatmul.f32.gmra.mxu0 %v69
    %v234 = vpop.f32.mrf.mxu0
    %v235 = vadd.f32 0.0, %v234
    %236 = vdwg.mxu0
    %237 = vmatpush.msra.mxu0 %v196
    %238 = vmatpush.msra.mxu0 %v193
    %239 = vmatpush.msra.mxu0 %v190
    %240 = vmatpush.msra.mxu0 %v187
    %241 = vmatpush.msra.mxu0 %v184
    %242 = vmatpush.msra.mxu0 %v181
    %243 = vmatpush.msra.mxu0 %v178
    %244 = vmatpush.msra.mxu0 %v175
    %245 = vmatpush.msra.mxu0 %v172
    %246 = vmatpush.msra.mxu0 %v169
    %247 = vmatpush.msra.mxu0 %v166
    %248 = vmatpush.msra.mxu0 %v163
    %249 = vmatpush.msra.mxu0 %v160
    %250 = vmatpush.msra.mxu0 %v157
    %251 = vmatpush.msra.mxu0 %v154
    %252 = vmatpush.msra.mxu0 %v151
    %253 = vmatmul.f32.gmra.mxu0 %v69
    %v254 = vpop.f32.mrf.mxu0
    %v255 = vadd.f32 0.0, %v254
    %256 = vdwg.mxu0
    %v257 = vadd.f32 %v107, %v215
    %v258 = vadd.f32 %v127, %v235
    %v259 = vxor.u32 %v257, 2147483648
    %v260 = vxor.u32 %v258, 2147483648
    %v261 = vmul.f32 %v259, 1.442695
    %v262 = vpow.pop %v261
    %v263 = vmul.f32 %v260, 1.442695
    %v264 = vpow.pop %v263
    %v265 = vadd.f32 %v262, 1.0
    %v266 = vadd.f32 %v264, 1.0
    %v267 = vrcp.pop %v265
    %v268 = vmul.f32 %v265, %v267
    %v269 = vsub.f32 1.0, %v268
    %v270 = vmul.f32 %v267, %v269
    %v271 = vadd.f32 %v267, %v270
    %vm272 = vweird.f32 %v265
    %vm273 = vweird.f32 %v267
    %vm274 = vmor %vm272, %vm273
    %v275 = vsel %vm274, %v267, %v271
    %v276 = vand.u32 2147483647, %v265
    %vm277 = vcmp.eq.f32.partialorder %v276, 8.507059e+37
    %v278 = vand.u32 %v265, 2147483648
    %v279 = vor.u32 1.1754944e-38, %v278
    %v280 = vsel %vm277, %v279, %v275
    %v281 = vmul.f32 1.0, %v280
    %v282 = vrcp.pop %v266
    %v283 = vmul.f32 %v266, %v282
    %v284 = vsub.f32 1.0, %v283
    %v285 = vmul.f32 %v282, %v284
    %v286 = vadd.f32 %v282, %v285
    %vm287 = vweird.f32 %v266
    %vm288 = vweird.f32 %v282
    %vm289 = vmor %vm287, %vm288
    %v290 = vsel %vm289, %v282, %v286
    %v291 = vand.u32 2147483647, %v266
    %vm292 = vcmp.eq.f32.partialorder %v291, 8.507059e+37
    %v293 = vand.u32 %v266, 2147483648
    %v294 = vor.u32 1.1754944e-38, %v293
    %v295 = vsel %vm292, %v294, %v290
    %v296 = vmul.f32 1.0, %v295
    %v297 = vld [vmem:[%s5] sm:$0x1]
    %v299 = vperm.slane %v297, 0
    %v301 = vadd.f32 %v255, %v299
    %v302 = vmul.f32 %v281, %v301
    %v303 = vadd.f32 %v147, %v302
    %v304 = vtanh.pop %v303
    %v305 = vsub.f32 %v69, %v304
    %v306 = vmul.f32 %v296, %v305
    %v307 = vadd.f32 %v304, %v306
    %308 = vst [vmem:[#allocation8] sm:$0xff] %v307
    // Predicated region
    $region38: #{tpu_custom_call.1} parent=1 // pred_check
      _
    $region39: #{tpu_custom_call.1} parent=1 // pred_check_branch
      %310 = sbr.rel (0) target = $region41
    $region40: #{tpu_custom_call.1} parent=1 // pred_region
      %312 = vsyncadd [#allocation4], 0
      %s314 = sshll.u32 [#allocation8], 4
      %s315 = int_to_ptr.vmem [resolvable:$true] %s314
      %s316 = sshll.u32 %s6, 4
      %s317 = int_to_ptr.hbm [resolvable:$true] %s316
      %319 = dma.vmem_to_hbm [thread:$0]  %s315, 128, %s317, [#allocation4]
    $region41: #{tpu_custom_call.1} parent=1 // pred_fallthru
      _
    // Predicated region
    $region42: #{tpu_custom_call.1} parent=1 // pred_check
      _
    $region43: #{tpu_custom_call.1} parent=1 // pred_check_branch
      %321 = sbr.rel (0) target = $region45
    $region44: #{tpu_custom_call.1} parent=1 // pred_region
      %323 = dma.done [#allocation4], 128
    $region45: #{tpu_custom_call.1} parent=1 // pred_fallthru
      _
    %324 = vsyncpa [#allocation3], 1
    %325 = vsyncpa [#allocation6], 1
    %326 = vsyncpa [#allocation4], 1

</llo_original>
